<compile_context>
chip_gen: v5e
topology: v5e:2x2
jax: 0.10.0
libtpu: 0.0.40
codegen_flags: <defaults>
</compile_context>

<pallas_src>
import functools

import jax
import jax.numpy as jnp
from jax.experimental import pallas as pl
from jax.experimental.pallas import tpu as pltpu


def _round_up(x: int, m: int) -> int:
    return (x + m - 1) // m * m


def _make_lm_head_kernel(d_real: int, eps: float = 1e-5):
    """Build the RMSNorm + output-projection kernel.

    grid = (T_tiles, V_tiles); j = program_id(1) is the V axis.

    x_ref : [tm, Dp] f32   token hidden states (padded columns are zero)
    wn_ref: [1,  Dp] f32   RMSNorm scale
    wo_ref: [Dp, tn] bf16  output head weight tile
    o_ref : [tm, tn] f32   logits tile
    xn_ref: [tm, Dp] bf16  VMEM scratch holding the normalized activations
    """
    inv_d = 1.0 / float(d_real)

    def kernel(x_ref, wn_ref, wo_ref, o_ref, xn_ref):
        # RMSNorm once per T-tile (hoisted out of the V loop).
        @pl.when(pl.program_id(1) == 0)
        def _():
            x = x_ref[...].astype(jnp.float32)
            # sum/real_D (not mean): padded zero columns must not dilute the norm.
            ss = jnp.sum(x * x, axis=-1, keepdims=True)
            inv = jax.lax.rsqrt(ss * inv_d + eps)
            xn = x * inv * wn_ref[...].astype(jnp.float32)
            xn_ref[...] = xn.astype(xn_ref.dtype)

        # bf16 x bf16 -> f32 accumulation on the MXU.
        o_ref[...] = jnp.dot(
            xn_ref[...], wo_ref[...],
            preferred_element_type=jnp.float32,
        ).astype(o_ref.dtype)

    return kernel


def lm_head_forward(hidden, w_norm, w_out, *, tm=None, tn=None):
    """RMSNorm + output projection: [T, D] -> [T, V] logits (f32)."""
    T, D = hidden.shape
    V = w_out.shape[1]

    # Lane/sublane-aligned, VMEM-budgeted tiles.
    Dp = _round_up(D, 128)
    if tm is None:
        tm = min(256, _round_up(T, 16))
    if tn is None:
        tn = min(512, _round_up(V, 128))
    Tp = _round_up(T, tm)
    Vp = _round_up(V, tn)

    # Zero-pad (padded D columns are zero so the norm and matmul are unaffected).
    hidden_p = jnp.pad(hidden.astype(jnp.float32), ((0, Tp - T), (0, Dp - D)))
    wn_p = jnp.pad(w_norm.astype(jnp.float32).reshape(1, D), ((0, 0), (0, Dp - D)))
    wo_p = jnp.pad(w_out.astype(jnp.bfloat16), ((0, Dp - D), (0, Vp - V)))

    grid = (Tp // tm, Vp // tn)

    cost = pl.CostEstimate(
        flops=2 * Tp * Dp * Vp,
        transcendentals=Tp,
        bytes_accessed=Tp * Dp * 4 + Dp * Vp * 2 + Tp * Vp * 4,
    )

    out = pl.pallas_call(
        _make_lm_head_kernel(D),
        out_shape=jax.ShapeDtypeStruct((Tp, Vp), jnp.float32),
        grid_spec=pltpu.PrefetchScalarGridSpec(
            num_scalar_prefetch=0,
            grid=grid,
            in_specs=[
                pl.BlockSpec((tm, Dp), lambda i, j: (i, 0)),   # activations
                pl.BlockSpec((1, Dp), lambda i, j: (0, 0)),    # rmsnorm scale
                pl.BlockSpec((Dp, tn), lambda i, j: (0, j)),   # weight tile
            ],
            out_specs=pl.BlockSpec((tm, tn), lambda i, j: (i, j)),
            scratch_shapes=[pltpu.VMEM((tm, Dp), jnp.bfloat16)],
        ),
        compiler_params=pltpu.CompilerParams(
            # T axis parallel (megacore on v7x); V axis sequential because the
            # normalized-activation scratch is reused across V tiles.
            dimension_semantics=("parallel", "arbitrary"),
        ),
        cost_estimate=cost,
    )(hidden_p, wn_p, wo_p)

    return out[:T, :V]


def model_forward(input_ids, seqlens, embedding, w_norm, w_out, *, tm=None, tn=None):
    """ModelBase.forward(input_ids, seqlens, cache=None) -> logits [T, V]."""
    del seqlens  # flattened token-major layout already encodes packing
    # Embedding gather (glue, plain JAX).
    hidden = jnp.take(embedding, input_ids, axis=0)  # [T, D]
    # Hot path in Pallas.
    return lm_head_forward(hidden, w_norm, w_out, tm=tm, tn=tn)


if __name__ == "__main__":
    key = jax.random.PRNGKey(0)
    k_emb, k_out, k_ids, k_norm = jax.random.split(key, 4)

    vocab = 512
    hidden_dim = 128
    seqlens = [16, 16]
    T = sum(seqlens)  # 32 tokens total

    # Deterministic synthetic parameters.
    embedding = jax.random.normal(k_emb, (vocab, hidden_dim), jnp.float32) * 0.02
    w_norm = 1.0 + 0.1 * jax.random.normal(k_norm, (hidden_dim,), jnp.float32)
    w_out = (jax.random.normal(k_out, (hidden_dim, vocab), jnp.float32) * 0.02
             ).astype(jnp.bfloat16)

    input_ids = jax.random.randint(k_ids, (T,), 0, vocab, dtype=jnp.int32)

    logits = model_forward(input_ids, seqlens, embedding, w_norm, w_out,
                           tm=16, tn=256)  # grid = (2, 2)
    logits = jax.block_until_ready(logits)

    # Reference check in plain JAX (same bf16 MXU operands, f32 accumulation).
    x = jnp.take(embedding, input_ids, axis=0)
    xn = x * jax.lax.rsqrt(jnp.mean(x * x, axis=-1, keepdims=True) + 1e-5) * w_norm
    ref = jnp.dot(xn.astype(jnp.bfloat16), w_out,
                  preferred_element_type=jnp.float32)

    assert logits.shape == (T, vocab)
    assert jnp.allclose(logits, ref, atol=1e-2, rtol=1e-2), \
        float(jnp.max(jnp.abs(logits - ref)))

    print("KERNEL_OK")
</pallas_src>

<mosaic_0001>
module attributes {stable_mosaic.version = 11 : i64} {
  func.func @kernel(%arg0: i32, %arg1: i32, %arg2: memref<16x128xf32, #tpu.memory_space<vmem>>, %arg3: memref<1x128xf32, #tpu.memory_space<vmem>>, %arg4: memref<128x256xbf16, #tpu.memory_space<vmem>>, %arg5: memref<16x256xf32, #tpu.memory_space<vmem>>, %arg6: memref<16x128xbf16, #tpu.memory_space<vmem>>) attributes {dimension_semantics = [#tpu.dimension_semantics<parallel>, #tpu.dimension_semantics<arbitrary>], iteration_bounds = array<i64: 2, 2>, scalar_prefetch = 0 : i64, scratch_operands = 1 : i64, tpu.core_type = #tpu.core_type<tc>, window_params = [{transform_indices = @transform_0, window_bounds = array<i64: 16, 128>}, {pipeline_mode = #tpu.pipeline_mode<synchronous>, transform_indices = @transform_1, window_bounds = array<i64: 1, 128>}, {transform_indices = @transform_2, window_bounds = array<i64: 128, 256>}, {transform_indices = @transform_3, window_bounds = array<i64: 16, 256>}]} {
    %c0_i32 = arith.constant 0 : i32
    %0 = arith.cmpi eq, %arg1, %c0_i32 : i32
    %1 = arith.extui %0 : i1 to i32
    %c0_i32_0 = arith.constant 0 : i32
    %2 = arith.cmpi ne, %1, %c0_i32_0 : i32
    scf.if %2 {
      %c0_6 = arith.constant 0 : index
      %c0_7 = arith.constant 0 : index
      %7 = vector.load %arg2[%c0_6, %c0_7] : memref<16x128xf32, #tpu.memory_space<vmem>>, vector<16x128xf32>
      %8 = arith.mulf %7, %7 : vector<16x128xf32>
      %cst_8 = arith.constant dense<0.000000e+00> : vector<16xf32>
      %9 = vector.multi_reduction <add>, %8, %cst_8 [1] : vector<16x128xf32> to vector<16xf32>
      %10 = vector.shape_cast %9 : vector<16xf32> to vector<16x1xf32>
      %cst_9 = arith.constant 7.812500e-03 : f32
      %11 = vector.broadcast %cst_9 : f32 to vector<16x1xf32>
      %12 = arith.mulf %10, %11 : vector<16x1xf32>
      %cst_10 = arith.constant 9.99999974E-6 : f32
      %13 = vector.broadcast %cst_10 : f32 to vector<16x1xf32>
      %14 = arith.addf %12, %13 : vector<16x1xf32>
      %15 = math.rsqrt %14 : vector<16x1xf32>
      %16 = vector.broadcast %15 : vector<16x1xf32> to vector<16x128xf32>
      %17 = arith.mulf %7, %16 : vector<16x128xf32>
      %c0_11 = arith.constant 0 : index
      %c0_12 = arith.constant 0 : index
      %18 = vector.load %arg3[%c0_11, %c0_12] : memref<1x128xf32, #tpu.memory_space<vmem>>, vector<1x128xf32>
      %19 = vector.broadcast %18 : vector<1x128xf32> to vector<16x128xf32>
      %20 = arith.mulf %17, %19 : vector<16x128xf32>
      %21 = arith.truncf %20 : vector<16x128xf32> to vector<16x128xbf16>
      %c0_13 = arith.constant 0 : index
      %c0_14 = arith.constant 0 : index
      %22 = vector.load %arg6[%c0_13, %c0_14] : memref<16x128xbf16, #tpu.memory_space<vmem>>, vector<16x128xbf16>
      tpu.vector_store %arg6[%c0_13, %c0_14], %21 {strides = array<i32>} : memref<16x128xbf16, #tpu.memory_space<vmem>>, vector<16x128xbf16>,
    } else {
    }
    %c0 = arith.constant 0 : index
    %c0_1 = arith.constant 0 : index
    %3 = vector.load %arg6[%c0, %c0_1] : memref<16x128xbf16, #tpu.memory_space<vmem>>, vector<16x128xbf16>
    %c0_2 = arith.constant 0 : index
    %c0_3 = arith.constant 0 : index
    %4 = vector.load %arg4[%c0_2, %c0_3] : memref<128x256xbf16, #tpu.memory_space<vmem>>, vector<128x256xbf16>
    %cst = arith.constant dense<0.000000e+00> : vector<16x256xf32>
    %5 = tpu.matmul %3, %4, %cst {dimension_numbers = #tpu.dot_dimension_numbers<[1], [0], [0], [1], [0, 0, 1, 1], [], []>} : vector<16x128xbf16>, vector<128x256xbf16>, vector<16x256xf32> -> vector<16x256xf32>
    %c0_4 = arith.constant 0 : index
    %c0_5 = arith.constant 0 : index
    %6 = vector.load %arg5[%c0_4, %c0_5] : memref<16x256xf32, #tpu.memory_space<vmem>>, vector<16x256xf32>
    tpu.vector_store %arg5[%c0_4, %c0_5], %5 {strides = array<i32>} : memref<16x256xf32, #tpu.memory_space<vmem>>, vector<16x256xf32>,
    return
  }
  func.func @transform_0(%arg0: i32, %arg1: i32) -> (i32, i32) {
    %c0_i32 = arith.constant 0 : i32
    %c0_i32_0 = arith.constant 0 : i32
    return %arg0, %c0_i32 : i32, i32
  }
  func.func @transform_1(%arg0: i32, %arg1: i32) -> (i32, i32) {
    %c0_i32 = arith.constant 0 : i32
    %c0_i32_0 = arith.constant 0 : i32
    %c0_i32_1 = arith.constant 0 : i32
    return %c0_i32, %c0_i32_0 : i32, i32
  }
  func.func @transform_2(%arg0: i32, %arg1: i32) -> (i32, i32) {
    %c0_i32 = arith.constant 0 : i32
    %c0_i32_0 = arith.constant 0 : i32
    return %c0_i32, %arg1 : i32, i32
  }
  func.func @transform_3(%arg0: i32, %arg1: i32) -> (i32, i32) {
    %c0_i32 = arith.constant 0 : i32
    return %arg0, %arg1 : i32, i32
  }
}

</mosaic_0001>

<llo_original>
// kernel: tpu_custom_call.1
$region0: #{tpu_custom_call.1}
  #allocation0 [shape = 'u32[]', space=smem, size = 0x4, offset = 0x4, fixed_abs, tag = 'smem constant byte address 0x4 - core index']
  #allocation1 [shape = 'u32[72,128]{1,0:T(1,128)}', space=vmem, size = 0x9000, scoped, tag = 'internal scratch']
  #allocation2 [shape = 'bf16[16,128]{1,0:T(8,128)(2,1)}', space=vmem, size = 0x1000, scoped, tag = 'scratch operand']
  %s0 = inlined_call_operand.hbm [shape: f32[32,128], index: 0, kind: input, shape index: {}]
  %s1 = inlined_call_operand.hbm [shape: f32[1,128], index: 1, kind: input, shape index: {}]
  %s2 = inlined_call_operand.hbm [shape: bf16[128,512], index: 2, kind: input, shape index: {}]
  %s3 = inlined_call_operand.hbm [shape: f32[32,512], index: 3, kind: output, shape index: {}]
  %s4 = sld [smem:[#allocation0]]
  $region61: #{tpu_custom_call.1} parent=0
    _
  %s6 = ssub.s32 1, %s4
  %s7 = scalar_select 0, %s6, %s4
  $region1: #{tpu_custom_call.1} parent=0
    #allocation3 [shape = 'u8[16384]{0}', space=vmem, size = 0x4000, scoped, tag = 'input window, operand 0']
    #allocation4 [shape = 's32[2]{0}', space=sflag, size = 0x8, scoped, tag = 'scoped memory for tpu_custom_call.1']
    #allocation5 [shape = 's32[2]{0}', space=sflag, size = 0x8, scoped, tag = 'scoped memory for tpu_custom_call.1']
    #allocation6 [shape = 'u8[512]{0}', space=vmem, size = 0x400, scoped, tag = 'input window, operand 1, single buffered']
    #allocation7 [shape = 's32[1]{0}', space=sflag, size = 0x4, scoped, tag = 'scoped memory for tpu_custom_call.1']
    #allocation8 [shape = 'u8[131072]{0}', space=vmem, size = 0x20000, scoped, tag = 'input window, operand 2']
    #allocation9 [shape = 'u8[32768]{0}', space=vmem, size = 0x8000, scoped, tag = 'output window, operand 0']
    %8 = vsyncpa [#allocation4], 0
    %s9 = scalar_lea.sflag [#allocation4], 1
    %10 = vsyncpa %s9, 0
    %11 = vsyncpa [#allocation7], 0
    %12 = vsyncpa [#allocation5], 0
    %s13 = scalar_lea.sflag [#allocation5], 1
    %14 = vsyncpa %s13, 0
    loop: start=0, step=1, limit=6
    $region2: #{tpu_custom_call.1} parent=1 // loop_pre_header
      _
    $region3: #{tpu_custom_call.1} parent=1 // loop_header
      %s16 = sphi 0, %s20
      %p17 = scmp.ge.s32.totalorder %s16, 6
      %s23 = sphi 0, %s35
      %s24 = sphi 0, %s31
      %s25 = sphi 0, %s23
      %s26 = sphi 0, %s24
      %s27 = sphi 0, %s25
      %s28 = sphi 0, %s26
      %s38 = sphi 0, %s40
      %s41 = sphi 0, %s38
      %s42 = sphi 0, %s41
      %s58 = sphi 0, %s42
      %s62 = sphi 0, %s62
      %s64 = sphi 0, %s62
      %s65 = sphi 0, %s64
      %s79 = sphi 0, %s65
      %s85 = sphi 0, %s87
      %s88 = sphi 0, %s85
      %s89 = sphi 0, %s88
      %s105 = sphi 0, %s89
      %s113 = sphi 0, %s115
      %s116 = sphi 0, %s113
      %s117 = sphi 0, %s116
      %s133 = sphi 0, %s117
    $region4: #{tpu_custom_call.1} parent=1 // loop_header_branch
      %19 = sbr.rel (%p17) target = $region8
    $region5: #{tpu_custom_call.1} parent=1 // loop_body
      %s21 = ssub.s32 %s16, 1
      %s22 = ssub.s32 %s16, 2
      %s29 = sadd.s32 1, %s24
      %p30 = scmp.ge.s32.totalorder %s29, 2
      %s31 = scalar_select %p30, 0, %s29
      %s32 = sadd.s32 1, %s23
      %s33 = scalar_select %p30, %s32, %s23
      %p34 = scmp.ge.s32.totalorder %s33, 2
      %s35 = scalar_select %p34, 0, %s33
      %s36 = ssub.s32 %s23, %s35
      %p37 = scmp.eq.s32.totalorder %s36, 0
      %s39 = sadd.s32 %s38, 1
      %s40 = scalar_select %p37, %s38, %s39
      %p43 = pneg %p37
      %p44 = scmp.eq.s32.totalorder %s16, 3
      %p45 = por %p43, %p44
      %p46 = scmp.ne.s32.totalorder %s38, %s41
      %p47 = scmp.eq.s32.totalorder %s16, 0
      %p48 = por %p46, %p47
      %p49 = scmp.ne.s32.totalorder %s38, %s41
      %p50 = scmp.eq.s32.totalorder %s21, 3
      %p51 = por %p49, %p50
      %p52 = scmp.ne.s32.totalorder %s41, %s42
      %p53 = scmp.eq.s32.totalorder %s21, 0
      %p54 = por %p52, %p53
      %p55 = scmp.ne.s32.totalorder %s41, %s42
      %p56 = scmp.eq.s32.totalorder %s22, 3
      %p57 = por %p55, %p56
      %p59 = scmp.ne.s32.totalorder %s42, %s58
      %p60 = scmp.eq.s32.totalorder %s22, 0
      %p61 = por %p59, %p60
      %s63 = sadd.s32 %s62, 1
      %p66 = scmp.eq.s32.totalorder %s16, 3
      %p67 = scmp.ne.s32.totalorder %s62, %s64
      %p68 = scmp.eq.s32.totalorder %s16, 0
      %p69 = por %p67, %p68
      %p70 = scmp.ne.s32.totalorder %s62, %s64
      %p71 = scmp.eq.s32.totalorder %s21, 3
      %p72 = por %p70, %p71
      %p73 = scmp.ne.s32.totalorder %s64, %s65
      %p74 = scmp.eq.s32.totalorder %s21, 0
      %p75 = por %p73, %p74
      %p76 = scmp.ne.s32.totalorder %s64, %s65
      %p77 = scmp.eq.s32.totalorder %s22, 3
      %p78 = por %p76, %p77
      %p80 = scmp.ne.s32.totalorder %s65, %s79
      %p81 = scmp.eq.s32.totalorder %s22, 0
      %p82 = por %p80, %p81
      %s83 = ssub.s32 %s24, %s31
      %p84 = scmp.eq.s32.totalorder %s83, 0
      %s86 = sadd.s32 %s85, 1
      %s87 = scalar_select %p84, %s85, %s86
      %p90 = pneg %p84
      %p91 = scmp.eq.s32.totalorder %s16, 3
      %p92 = por %p90, %p91
      %p93 = scmp.ne.s32.totalorder %s85, %s88
      %p94 = scmp.eq.s32.totalorder %s16, 0
      %p95 = por %p93, %p94
      %p96 = scmp.ne.s32.totalorder %s85, %s88
      %p97 = scmp.eq.s32.totalorder %s21, 3
      %p98 = por %p96, %p97
      %p99 = scmp.ne.s32.totalorder %s88, %s89
      %p100 = scmp.eq.s32.totalorder %s21, 0
      %p101 = por %p99, %p100
      %p102 = scmp.ne.s32.totalorder %s88, %s89
      %p103 = scmp.eq.s32.totalorder %s22, 3
      %p104 = por %p102, %p103
      %p106 = scmp.ne.s32.totalorder %s89, %s105
      %p107 = scmp.eq.s32.totalorder %s22, 0
      %p108 = por %p106, %p107
      %s109 = ssub.s32 %s23, %s35
      %s110 = ssub.s32 %s24, %s31
      %s111 = sor.u32 %s109, %s110
      %p112 = scmp.eq.s32.totalorder %s111, 0
      %s114 = sadd.s32 %s113, 1
      %s115 = scalar_select %p112, %s113, %s114
      %p118 = pneg %p112
      %p119 = scmp.eq.s32.totalorder %s16, 3
      %p120 = por %p118, %p119
      %p121 = scmp.ne.s32.totalorder %s113, %s116
      %p122 = scmp.eq.s32.totalorder %s16, 0
      %p123 = por %p121, %p122
      %p124 = scmp.ne.s32.totalorder %s113, %s116
      %p125 = scmp.eq.s32.totalorder %s21, 3
      %p126 = por %p124, %p125
      %p127 = scmp.ne.s32.totalorder %s116, %s117
      %p128 = scmp.eq.s32.totalorder %s21, 0
      %p129 = por %p127, %p128
      %p130 = scmp.ne.s32.totalorder %s116, %s117
      %p131 = scmp.eq.s32.totalorder %s22, 3
      %p132 = por %p130, %p131
      %p134 = scmp.ne.s32.totalorder %s117, %s133
      %p135 = scmp.eq.s32.totalorder %s22, 0
      %p136 = por %p134, %p135
      %p137 = scmp.le.s32.totalorder 1, %s16
      %p138 = scmp.lt.s32.totalorder %s16, 5
      %p139 = pnand %p137, %p138
      %p140 = pneg %p139
      // Predicated region
      $region9: #{tpu_custom_call.1} parent=5 // pred_check
        _
      $region10: #{tpu_custom_call.1} parent=5 // pred_check_branch
        %142 = sbr.rel (%p139) target = $region12
      $region11: #{tpu_custom_call.1} parent=5 // pred_region
        %s143 = ssub.s32 %s16, 1
        // Predicated region
        $region13: #{tpu_custom_call.1} parent=11 // pred_check
          %p144 = pneg %p75
        $region14: #{tpu_custom_call.1} parent=11 // pred_check_branch
          %146 = sbr.rel (%p144) target = $region16
        $region15: #{tpu_custom_call.1} parent=11 // pred_region
          %148 = vsyncadd [#allocation7], 0
          %s150 = sshll.u32 %s1, 4
          %s151 = int_to_ptr.hbm [resolvable:$true] %s150
          %s152 = sshll.u32 [#allocation6], 4
          %s153 = int_to_ptr.vmem [resolvable:$true] %s152
          %155 = dma.hbm_to_vmem [thread:$0]  %s151, 16, %s153, [#allocation7]
        $region16: #{tpu_custom_call.1} parent=11 // pred_fallthru
          _
      $region12: #{tpu_custom_call.1} parent=5 // pred_fallthru
        _
      %p156 = scmp.lt.s32.totalorder %s16, 4
      // Predicated region
      $region17: #{tpu_custom_call.1} parent=5 // pred_check
        %p157 = pneg %p156
      $region18: #{tpu_custom_call.1} parent=5 // pred_check_branch
        %159 = sbr.rel (%p157) target = $region20
      $region19: #{tpu_custom_call.1} parent=5 // pred_region
        // Predicated region
        $region21: #{tpu_custom_call.1} parent=19 // pred_check
          %p160 = pneg %p48
        $region22: #{tpu_custom_call.1} parent=19 // pred_check_branch
          %162 = sbr.rel (%p160) target = $region24
        $region23: #{tpu_custom_call.1} parent=19 // pred_region
          %s163 = sand.u32 %s16, 1
          %s164 = scalar_lea.sflag [#allocation4], %s163
          %s165 = sand.u32 %s38, 1
          %s166 = smul.addr %s165, 16
          %s167 = scalar_lea.vmem [#allocation3], %s166
          %s168 = smul.u32 2, %s23
          %170 = vsyncadd %s164, 0
          %s171 = smul.addr %s168, 8
          %s172 = scalar_lea.hbm %s0, %s171
          %s173 = sshll.u32 %s172, 4
          %s174 = int_to_ptr.hbm [resolvable:$true] %s173
          %s175 = sshll.u32 %s167, 4
          %s176 = int_to_ptr.vmem [resolvable:$true] %s175
          %181 = dma.hbm_to_vmem [thread:$0]  %s174, 256, %s176, %s164, 128, 128, 8
        $region24: #{tpu_custom_call.1} parent=19 // pred_fallthru
          _
        // Predicated region
        $region25: #{tpu_custom_call.1} parent=19 // pred_check
          %p182 = pneg %p95
        $region26: #{tpu_custom_call.1} parent=19 // pred_check_branch
          %184 = sbr.rel (%p182) target = $region28
        $region27: #{tpu_custom_call.1} parent=19 // pred_region
          %s185 = sand.u32 %s16, 1
          %s186 = scalar_lea.sflag [#allocation4], %s185
          %s187 = sand.u32 %s85, 1
          %s188 = smul.addr %s187, 128
          %s189 = scalar_lea.vmem [#allocation8], %s188
          %s190 = smul.u32 2, %s24
          %192 = vsyncadd %s186, 0
          %s193 = smul.addr %s190, 4
          %s194 = scalar_lea.hbm %s2, %s193
          %s195 = sshll.u32 %s194, 4
          %s196 = int_to_ptr.hbm [resolvable:$true] %s195
          %s197 = sshll.u32 %s189, 4
          %s198 = int_to_ptr.vmem [resolvable:$true] %s197
          %203 = dma.hbm_to_vmem [thread:$0]  %s196, 2048, %s198, %s186, 256, 128, 8
        $region28: #{tpu_custom_call.1} parent=19 // pred_fallthru
          _
      $region20: #{tpu_custom_call.1} parent=5 // pred_fallthru
        _
      %p204 = scmp.le.s32.totalorder 1, %s16
      %p205 = scmp.lt.s32.totalorder %s16, 5
      %p206 = pnand %p204, %p205
      %p207 = pneg %p206
      // Predicated region
      $region29: #{tpu_custom_call.1} parent=5 // pred_check
        _
      $region30: #{tpu_custom_call.1} parent=5 // pred_check_branch
        %209 = sbr.rel (%p206) target = $region32
      $region31: #{tpu_custom_call.1} parent=5 // pred_region
        %s210 = ssub.s32 %s16, 1
        %s211 = sand.u32 %s21, 1
        %s212 = scalar_lea.sflag [#allocation4], %s211
        %s213 = sand.u32 %s41, 1
        %s214 = smul.addr %s213, 16
        %s215 = scalar_lea.vmem [#allocation3], %s214
        // Predicated region
        $region33: #{tpu_custom_call.1} parent=31 // pred_check
          %p216 = pneg %p54
        $region34: #{tpu_custom_call.1} parent=31 // pred_check_branch
          %218 = sbr.rel (%p216) target = $region36
        $region35: #{tpu_custom_call.1} parent=31 // pred_region
          %220 = dma.done %s212, 256
        $region36: #{tpu_custom_call.1} parent=31 // pred_fallthru
          _
        // Predicated region
        $region37: #{tpu_custom_call.1} parent=31 // pred_check
          %p221 = pneg %p75
        $region38: #{tpu_custom_call.1} parent=31 // pred_check_branch
          %223 = sbr.rel (%p221) target = $region40
        $region39: #{tpu_custom_call.1} parent=31 // pred_region
          %225 = dma.done [#allocation7], 16
        $region40: #{tpu_custom_call.1} parent=31 // pred_fallthru
          _
        %s226 = sand.u32 %s21, 1
        %s227 = scalar_lea.sflag [#allocation4], %s226
        %s228 = sand.u32 %s88, 1
        %s229 = smul.addr %s228, 128
        %s230 = scalar_lea.vmem [#allocation8], %s229
        // Predicated region
        $region41: #{tpu_custom_call.1} parent=31 // pred_check
          %p231 = pneg %p101
        $region42: #{tpu_custom_call.1} parent=31 // pred_check_branch
          %233 = sbr.rel (%p231) target = $region44
        $region43: #{tpu_custom_call.1} parent=31 // pred_region
          %235 = dma.done %s227, 2048
        $region44: #{tpu_custom_call.1} parent=31 // pred_fallthru
          _
        %s236 = sand.u32 %s21, 1
        %s237 = scalar_lea.sflag [#allocation4], %s236
        %s238 = sand.u32 %s41, 1
        %s239 = smul.addr %s238, 16
        %s240 = scalar_lea.vmem [#allocation3], %s239
        %p241 = pneg %p54
        %p242 = pneg %p51
        %p243 = pneg %p75
        %p244 = pneg %p72
        %s245 = sand.u32 %s21, 1
        %s246 = scalar_lea.sflag [#allocation4], %s245
        %s247 = sand.u32 %s88, 1
        %s248 = smul.addr %s247, 128
        %s249 = scalar_lea.vmem [#allocation8], %s248
        %p250 = pneg %p101
        %p251 = pneg %p98
        %p252 = pneg %p129
        %p253 = pneg %p126
        %s254 = sand.u32 %s116, 1
        %s255 = scalar_lea.sflag [#allocation5], %s254
        %s256 = sand.u32 %s116, 1
        %s257 = smul.addr %s256, 32
        %s258 = scalar_lea.vmem [#allocation9], %s257
        %s259 = smul.u32 2, %s25
        %s260 = smul.u32 2, %s26
        %s261 = smul.u32 2, %s25
        %s262 = smul.u32 2, %s26
        %p263 = scmp.eq.s32.totalorder %s26, 0
        // Predicated region
        $region45: #{tpu_custom_call.1} parent=31 // pred_check
          %p264 = pneg %p263
        $region46: #{tpu_custom_call.1} parent=31 // pred_check_branch
          %266 = sbr.rel (%p264) target = $region48
        $region47: #{tpu_custom_call.1} parent=31 // pred_region
          %v267 = vld [vmem:[%s215] sm:$0xff]
          %v268 = vld [vmem:[%s215 + $0x8] sm:$0xff]
          %v269 = vmul.f32 %v267, %v267
          %v270 = vmul.f32 %v268, %v268
          %271 = vadd.xlane.f32.xlu0 %v269
          %v272 = vpop.xlane.xlu0 %271
          %273 = vadd.xlane.f32.xlu0 %v270
          %v274 = vpop.xlane.xlu0 %273
          %v275 = vmul.f32 %v272, 0.0078125
          %v276 = vmul.f32 %v274, 0.0078125
          %v277 = vadd.f32 %v275, 1e-05
          %v278 = vadd.f32 %v276, 1e-05
          %v279 = vrsqrt.pop %v277
          %v280 = vmul.f32 %v279, %v277
          %v281 = vmul.f32 %v280, %v279
          %v282 = vmul.f32 0.5, %v281
          %v283 = vsub.f32 1.5, %v282
          %v284 = vmul.f32 %v279, %v283
          %vm285 = vweird.f32 %v277
          %vm286 = vweird.f32 %v279
          %vm287 = vmor %vm285, %vm286
          %v288 = vsel %vm287, %v279, %v284
          %v289 = vrsqrt.pop %v278
          %v290 = vmul.f32 %v289, %v278
          %v291 = vmul.f32 %v290, %v289
          %v292 = vmul.f32 0.5, %v291
          %v293 = vsub.f32 1.5, %v292
          %v294 = vmul.f32 %v289, %v293
          %vm295 = vweird.f32 %v278
          %vm296 = vweird.f32 %v289
          %vm297 = vmor %vm295, %vm296
          %v298 = vsel %vm297, %v289, %v294
          %v299 = vmul.f32 %v267, %v288
          %v300 = vmul.f32 %v268, %v298
          %v301 = vld [vmem:[#allocation6] sm:$0x1]
          %v303 = vperm.slane %v301, 0
          %v305 = vmul.f32 %v299, %v303
          %v306 = vmul.f32 %v300, %v303
          %v307 = vpack.c.bf16 %v305, %v305
          %v308 = vpack.c.bf16 %v306, %v306
          %309 = vst [vmem:[#allocation2] sm:$0xf] %v307
          %310 = vst [vmem:[#allocation2 + $0x4] sm:$0xf] %v308
        $region48: #{tpu_custom_call.1} parent=31 // pred_fallthru
          _
        %v311 = vld [vmem:[#allocation2] sm:$0xf]
        %v312 = vld [vmem:[#allocation2 + $0x4] sm:$0xf]
        %v313 = vld [vmem:[%s230] sm:$0xff]
        %v314 = vld [vmem:[%s230 + $0x8] sm:$0xff]
        %v315 = vld [vmem:[%s230 + $0x10] sm:$0xff]
        %v316 = vld [vmem:[%s230 + $0x18] sm:$0xff]
        %v317 = vld [vmem:[%s230 + $0x20] sm:$0xff]
        %v318 = vld [vmem:[%s230 + $0x28] sm:$0xff]
        %v319 = vld [vmem:[%s230 + $0x30] sm:$0xff]
        %v320 = vld [vmem:[%s230 + $0x38] sm:$0xff]
        %v321 = vld [vmem:[%s230 + $0x40] sm:$0xff]
        %v322 = vld [vmem:[%s230 + $0x48] sm:$0xff]
        %v323 = vld [vmem:[%s230 + $0x50] sm:$0xff]
        %v324 = vld [vmem:[%s230 + $0x58] sm:$0xff]
        %v325 = vld [vmem:[%s230 + $0x60] sm:$0xff]
        %v326 = vld [vmem:[%s230 + $0x68] sm:$0xff]
        %v327 = vld [vmem:[%s230 + $0x70] sm:$0xff]
        %v328 = vld [vmem:[%s230 + $0x78] sm:$0xff]
        %v331 = vunpack.c.l.b16 %v311
        %v332 = vunpack.c.l.b16 %v312
        %v333 = vpack.c.b16 %v332, %v331
        %v351 = vunpack.c.l.b16 %v313
        %v352 = vunpack.c.h.b16 %v313
        %v353 = vunpack.c.l.b16 %v314
        %v354 = vunpack.c.h.b16 %v314
        %v355 = vunpack.c.l.b16 %v315
        %v356 = vunpack.c.h.b16 %v315
        %v357 = vunpack.c.l.b16 %v316
        %v358 = vunpack.c.h.b16 %v316
        %v359 = vunpack.c.l.b16 %v317
        %v360 = vunpack.c.h.b16 %v317
        %v361 = vunpack.c.l.b16 %v318
        %v362 = vunpack.c.h.b16 %v318
        %v363 = vunpack.c.l.b16 %v319
        %v364 = vunpack.c.h.b16 %v319
        %v365 = vunpack.c.l.b16 %v320
        %v366 = vunpack.c.h.b16 %v320
        %v367 = vunpack.c.l.b16 %v321
        %v368 = vunpack.c.h.b16 %v321
        %v369 = vunpack.c.l.b16 %v322
        %v370 = vunpack.c.h.b16 %v322
        %v371 = vunpack.c.l.b16 %v323
        %v372 = vunpack.c.h.b16 %v323
        %v373 = vunpack.c.l.b16 %v324
        %v374 = vunpack.c.h.b16 %v324
        %v375 = vunpack.c.l.b16 %v325
        %v376 = vunpack.c.h.b16 %v325
        %v377 = vunpack.c.l.b16 %v326
        %v378 = vunpack.c.h.b16 %v326
        %v379 = vunpack.c.l.b16 %v327
        %v380 = vunpack.c.h.b16 %v327
        %v381 = vunpack.c.l.b16 %v328
        %v382 = vunpack.c.h.b16 %v328
        %v383 = vpack.c.b16 %v353, %v351
        %v384 = vpack.c.b16 %v354, %v352
        %v385 = vpack.c.b16 %v357, %v355
        %v386 = vpack.c.b16 %v358, %v356
        %v387 = vpack.c.b16 %v361, %v359
        %v388 = vpack.c.b16 %v362, %v360
        %v389 = vpack.c.b16 %v365, %v363
        %v390 = vpack.c.b16 %v366, %v364
        %v391 = vpack.c.b16 %v369, %v367
        %v392 = vpack.c.b16 %v370, %v368
        %v393 = vpack.c.b16 %v373, %v371
        %v394 = vpack.c.b16 %v374, %v372
        %v395 = vpack.c.b16 %v377, %v375
        %v396 = vpack.c.b16 %v378, %v376
        %v397 = vpack.c.b16 %v381, %v379
        %v398 = vpack.c.b16 %v382, %v380
        %415 = vmatpush.bf16.msra.mxu0 %v397
        %416 = vmatpush.bf16.msra.mxu0 %v395
        %417 = vmatpush.bf16.msra.mxu0 %v393
        %418 = vmatpush.bf16.msra.mxu0 %v391
        %419 = vmatpush.bf16.msra.mxu0 %v389
        %420 = vmatpush.bf16.msra.mxu0 %v387
        %421 = vmatpush.bf16.msra.mxu0 %v385
        %422 = vmatpush.bf16.msra.mxu0 %v383
        %423 = vmatmul.bf16.gmra.mxu0 %v333
        %v424 = vpop.f32.mrf.mxu0
        %v425 = vadd.f32 0.0, %v424
        %v426 = vpop.f32.mrf.mxu0
        %v427 = vadd.f32 0.0, %v426
        %428 = vdwg.mxu0
        %429 = vmatpush.bf16.msra.mxu0 %v398
        %430 = vmatpush.bf16.msra.mxu0 %v396
        %431 = vmatpush.bf16.msra.mxu0 %v394
        %432 = vmatpush.bf16.msra.mxu0 %v392
        %433 = vmatpush.bf16.msra.mxu0 %v390
        %434 = vmatpush.bf16.msra.mxu0 %v388
        %435 = vmatpush.bf16.msra.mxu0 %v386
        %436 = vmatpush.bf16.msra.mxu0 %v384
        %437 = vmatmul.bf16.gmra.mxu0 %v333
        %v438 = vpop.f32.mrf.mxu0
        %v439 = vadd.f32 0.0, %v438
        %v440 = vpop.f32.mrf.mxu0
        %v441 = vadd.f32 0.0, %v440
        %442 = vdwg.mxu0
        %443 = vst [vmem:[%s258] sm:$0xff] %v425
        %444 = vst [vmem:[%s258 + $0x8] sm:$0xff] %v439
        %445 = vst [vmem:[%s258 + $0x10] sm:$0xff] %v427
        %446 = vst [vmem:[%s258 + $0x18] sm:$0xff] %v441
        %s447 = sand.u32 %s116, 1
        %s448 = scalar_lea.sflag [#allocation5], %s447
        %s449 = sand.u32 %s116, 1
        %s450 = smul.addr %s449, 32
        %s451 = scalar_lea.vmem [#allocation9], %s450
        // Predicated region
        $region49: #{tpu_custom_call.1} parent=31 // pred_check
          %p452 = pneg %p126
        $region50: #{tpu_custom_call.1} parent=31 // pred_check_branch
          %454 = sbr.rel (%p452) target = $region52
        $region51: #{tpu_custom_call.1} parent=31 // pred_region
          %s455 = smul.u32 2, %s25
          %s456 = smul.u32 2, %s26
          %458 = vsyncadd %s448, 0
          %s459 = smul.addr %s455, 4
          %s460 = sadd.s32 %s456, %s459
          %s461 = smul.addr %s460, 8
          %s462 = scalar_lea.hbm %s3, %s461
          %s463 = sshll.u32 %s451, 4
          %s464 = int_to_ptr.vmem [resolvable:$true] %s463
          %s465 = sshll.u32 %s462, 4
          %s466 = int_to_ptr.hbm [resolvable:$true] %s465
          %471 = dma.vmem_to_hbm [thread:$0]  %s464, 512, %s466, %s448, 256, 512, 16
        $region52: #{tpu_custom_call.1} parent=31 // pred_fallthru
          _
      $region32: #{tpu_custom_call.1} parent=5 // pred_fallthru
        _
      %p472 = scmp.le.s32.totalorder 2, %s16
      // Predicated region
      $region53: #{tpu_custom_call.1} parent=5 // pred_check
        %p473 = pneg %p472
      $region54: #{tpu_custom_call.1} parent=5 // pred_check_branch
        %475 = sbr.rel (%p473) target = $region56
      $region55: #{tpu_custom_call.1} parent=5 // pred_region
        %s476 = ssub.s32 %s16, 2
        // Predicated region
        $region57: #{tpu_custom_call.1} parent=55 // pred_check
          %p477 = pneg %p132
        $region58: #{tpu_custom_call.1} parent=55 // pred_check_branch
          %479 = sbr.rel (%p477) target = $region60
        $region59: #{tpu_custom_call.1} parent=55 // pred_region
          %s480 = sand.u32 %s117, 1
          %s481 = scalar_lea.sflag [#allocation5], %s480
          %s482 = sand.u32 %s117, 1
          %s483 = smul.addr %s482, 32
          %s484 = scalar_lea.vmem [#allocation9], %s483
          %486 = dma.done %s481, 512
        $region60: #{tpu_custom_call.1} parent=55 // pred_fallthru
          _
      $region56: #{tpu_custom_call.1} parent=5 // pred_fallthru
        _
    $region6: #{tpu_custom_call.1} parent=1 // loop_footer
      %s20 = sadd.s32 1, %s16
    $region7: #{tpu_custom_call.1} parent=1 // loop_footer_branch
      %15 = sbr.rel target = $region3
    $region8: #{tpu_custom_call.1} parent=1 // loop_exit
      _
    %487 = vsyncpa [#allocation4], 1
    %s488 = scalar_lea.sflag [#allocation4], 1
    %489 = vsyncpa %s488, 1
    %490 = vsyncpa [#allocation7], 1
    %491 = vsyncpa [#allocation5], 1
    %s492 = scalar_lea.sflag [#allocation5], 1
    %493 = vsyncpa %s492, 1

</llo_original>
